<compile_context>
chip_gen: v7x
topology: tpu7x:2x2x1
jax: 0.10.0
libtpu: 0.0.40
codegen_flags: <defaults>
</compile_context>

<pallas_src>
import jax
import jax.numpy as jnp
from jax.experimental import pallas as pl
from jax.experimental.pallas import tpu as pltpu

INPUT_DIM = 22  # 3 telemetry features + 19 TRACK_EDGE_* sensors
H1, H2, H3, OUT = 128, 64, 32, 3
OUT_PAD = 8     # narrow padded output width (final result sliced to OUT=3)


def _round_up(n, m):
    return ((n + m - 1) // m) * m


def torcsnet_kernel(x_ref, w1_ref, b1_ref, w2_ref, b2_ref,
                    w3_ref, b3_ref, w4_ref, b4_ref, o_ref):
    """Fused 4-layer MLP forward on one (TB, INPUT_DIM) batch tile.

    Layer 1 stays f32 (accuracy, and K=22 is nowhere near MXU-bound);
    layers 2-4 use bf16 MXU operands with f32 accumulation.  Bias add,
    ReLU and tanh stay in f32 on the VPU/EUP.
    """
    x = x_ref[...]  # (TB, 22) f32

    # Layer 1: Linear(22 -> 128) + ReLU   (Dropout(0.2) identity in eval)
    h = jnp.dot(x, w1_ref[...], preferred_element_type=jnp.float32) + b1_ref[...]
    h = jnp.maximum(h, 0.0)

    # Layer 2: Linear(128 -> 64) + ReLU   (Dropout(0.1) identity in eval)
    h = jnp.dot(h.astype(jnp.bfloat16), w2_ref[...],
                preferred_element_type=jnp.float32) + b2_ref[...]
    h = jnp.maximum(h, 0.0)

    # Layer 3: Linear(64 -> 32) + ReLU
    h = jnp.dot(h.astype(jnp.bfloat16), w3_ref[...],
                preferred_element_type=jnp.float32) + b3_ref[...]
    h = jnp.maximum(h, 0.0)

    # Layer 4: Linear(32 -> 3) + Tanh   (weights zero-padded to OUT_PAD=8
    # lanes; tanh(0) = 0 in the pad lanes, sliced off in the wrapper)
    h = jnp.dot(h.astype(jnp.bfloat16), w4_ref[...],
                preferred_element_type=jnp.float32) + b4_ref[...]
    o_ref[...] = jnp.tanh(h)


def prepare_params(params):
    """One-time glue: transpose PyTorch (out, in) weights to (in, out), cast
    layer 2-4 weights to bf16 (layer 1 stays f32), reshape biases to (1, N)
    f32, and zero-pad the final layer to OUT_PAD lanes."""
    w1 = params["w1"].T.astype(jnp.float32)              # (22, 128) f32
    w2 = params["w2"].T.astype(jnp.bfloat16)              # (128, 64)
    w3 = params["w3"].T.astype(jnp.bfloat16)              # (64, 32)
    w4 = params["w4"].T.astype(jnp.bfloat16)              # (32, 3)
    w4p = jnp.zeros((H3, OUT_PAD), jnp.bfloat16).at[:, :OUT].set(w4)

    b1 = params["b1"].reshape(1, H1).astype(jnp.float32)
    b2 = params["b2"].reshape(1, H2).astype(jnp.float32)
    b3 = params["b3"].reshape(1, H3).astype(jnp.float32)
    b4p = jnp.zeros((1, OUT_PAD), jnp.float32).at[:, :OUT].set(
        params["b4"].reshape(1, OUT).astype(jnp.float32))

    return (w1, b1, w2, b2, w3, b3, w4p, b4p)


def _pick_batch_tile(B, tb):
    """Batch tile: multiple of 8, capped at `tb`; prefer grid >= 2 so the
    'parallel' batch axis shards across v7x's two TensorCores."""
    B8 = _round_up(B, 8)
    TB = min(tb, B8)
    if B8 >= 16 and B8 // TB < 2:
        TB = _round_up((B8 + 1) // 2, 8)
    B_pad = _round_up(B, TB)
    return TB, B_pad


def torcsnet_forward(x, prepared, *, tb=2048):
    """x: (B, INPUT_DIM) f32.  prepared: output of prepare_params()."""
    B = x.shape[0]
    w1, b1, w2, b2, w3, b3, w4p, b4p = prepared

    TB, B_pad = _pick_batch_tile(B, tb)
    if B_pad != B:
        x = jnp.pad(x, ((0, B_pad - B), (0, 0)))

    grid = (B_pad // TB,)

    in_specs = [
        # x: tiled along the batch axis, stays f32 (cast happens in-kernel).
        pl.BlockSpec((TB, INPUT_DIM), lambda i: (i, 0)),
        # Weights / biases: grid-invariant (constant index maps -> resident).
        pl.BlockSpec((INPUT_DIM, H1), lambda i: (0, 0)),
        pl.BlockSpec((1, H1), lambda i: (0, 0)),
        pl.BlockSpec((H1, H2), lambda i: (0, 0)),
        pl.BlockSpec((1, H2), lambda i: (0, 0)),
        pl.BlockSpec((H2, H3), lambda i: (0, 0)),
        pl.BlockSpec((1, H3), lambda i: (0, 0)),
        pl.BlockSpec((H3, OUT_PAD), lambda i: (0, 0)),
        pl.BlockSpec((1, OUT_PAD), lambda i: (0, 0)),
    ]

    out = pl.pallas_call(
        torcsnet_kernel,
        out_shape=jax.ShapeDtypeStruct((B_pad, OUT_PAD), jnp.float32),
        grid=grid,
        in_specs=in_specs,
        out_specs=pl.BlockSpec((TB, OUT_PAD), lambda i: (i, 0)),
        compiler_params=pltpu.CompilerParams(
            dimension_semantics=("parallel",),
            vmem_limit_bytes=32 * 1024 * 1024,
        ),
    )(x, w1, b1, w2, b2, w3, b3, w4p, b4p)

    return out[:B, :OUT]


def init_params(key):
    """Deterministic init mirroring nn.Linear shapes (W: (out, in), b: (out,))."""
    keys = jax.random.split(key, 8)
    shapes = [(H1, INPUT_DIM), (H1,), (H2, H1), (H2,),
              (H3, H2), (H3,), (OUT, H3), (OUT,)]
    names = ["w1", "b1", "w2", "b2", "w3", "b3", "w4", "b4"]
    fan_ins = [INPUT_DIM, INPUT_DIM, H1, H1, H2, H2, H3, H3]
    params = {}
    for name, shp, fi, k in zip(names, shapes, fan_ins, keys):
        bound = 1.0 / (fi ** 0.5)
        params[name] = jax.random.uniform(
            k, shp, dtype=jnp.float32, minval=-bound, maxval=bound)
    return params


def torcsnet_reference(x, params):
    """Pure-JAX f32 reference of the same forward (eval mode)."""
    h = jnp.maximum(x @ params["w1"].T + params["b1"], 0.0)
    h = jnp.maximum(h @ params["w2"].T + params["b2"], 0.0)
    h = jnp.maximum(h @ params["w3"].T + params["b3"], 0.0)
    return jnp.tanh(h @ params["w4"].T + params["b4"])


if __name__ == "__main__":
    key = jax.random.PRNGKey(0)
    pkey, xkey = jax.random.split(key)
    params = init_params(pkey)
    prepared = prepare_params(params)   # one-time weight prep (hoisted glue)

    batch = 8
    x = jax.random.normal(xkey, (batch, INPUT_DIM), dtype=jnp.float32)

    out = torcsnet_forward(x, prepared)
    out = jax.block_until_ready(out)

    ref = torcsnet_reference(x, params)
    assert out.shape == (batch, OUT), out.shape
    # Layers 2-4 use bf16 MXU operands -> loosened tolerance vs f32 reference.
    assert jnp.allclose(out, ref, atol=2e-2, rtol=2e-2), "mismatch vs reference"

    # Also exercise an uneven / larger batch (padding + grid >= 2 path).
    x2 = jax.random.normal(jax.random.PRNGKey(1), (37, INPUT_DIM), jnp.float32)
    out2 = jax.block_until_ready(torcsnet_forward(x2, prepared))
    ref2 = torcsnet_reference(x2, params)
    assert out2.shape == (37, OUT), out2.shape
    assert jnp.allclose(out2, ref2, atol=2e-2, rtol=2e-2), "mismatch (B=37)"

    print("KERNEL_OK")
</pallas_src>

<mosaic_0001>
module attributes {stable_mosaic.version = 11 : i64} {
  func.func @torcsnet_kernel(%arg0: i32, %arg1: memref<8x22xf32, #tpu.memory_space<vmem>>, %arg2: memref<22x128xf32, #tpu.memory_space<vmem>>, %arg3: memref<1x128xf32, #tpu.memory_space<vmem>>, %arg4: memref<128x64xbf16, #tpu.memory_space<vmem>>, %arg5: memref<1x64xf32, #tpu.memory_space<vmem>>, %arg6: memref<64x32xbf16, #tpu.memory_space<vmem>>, %arg7: memref<1x32xf32, #tpu.memory_space<vmem>>, %arg8: memref<32x8xbf16, #tpu.memory_space<vmem>>, %arg9: memref<1x8xf32, #tpu.memory_space<vmem>>, %arg10: memref<8x8xf32, #tpu.memory_space<vmem>>) attributes {dimension_semantics = [#tpu.dimension_semantics<parallel>], iteration_bounds = array<i64: 1>, scalar_prefetch = 0 : i64, scratch_operands = 0 : i64, tpu.core_type = #tpu.core_type<tc>, window_params = [{transform_indices = @transform_0, window_bounds = array<i64: 8, 22>}, {pipeline_mode = #tpu.pipeline_mode<synchronous>, transform_indices = @transform_1, window_bounds = array<i64: 22, 128>}, {pipeline_mode = #tpu.pipeline_mode<synchronous>, transform_indices = @transform_2, window_bounds = array<i64: 1, 128>}, {pipeline_mode = #tpu.pipeline_mode<synchronous>, transform_indices = @transform_3, window_bounds = array<i64: 128, 64>}, {pipeline_mode = #tpu.pipeline_mode<synchronous>, transform_indices = @transform_4, window_bounds = array<i64: 1, 64>}, {pipeline_mode = #tpu.pipeline_mode<synchronous>, transform_indices = @transform_5, window_bounds = array<i64: 64, 32>}, {pipeline_mode = #tpu.pipeline_mode<synchronous>, transform_indices = @transform_6, window_bounds = array<i64: 1, 32>}, {pipeline_mode = #tpu.pipeline_mode<synchronous>, transform_indices = @transform_7, window_bounds = array<i64: 32, 8>}, {pipeline_mode = #tpu.pipeline_mode<synchronous>, transform_indices = @transform_8, window_bounds = array<i64: 1, 8>}, {transform_indices = @transform_9, window_bounds = array<i64: 8, 8>}]} {
    %c0 = arith.constant 0 : index
    %c0_0 = arith.constant 0 : index
    %0 = vector.load %arg1[%c0, %c0_0] : memref<8x22xf32, #tpu.memory_space<vmem>>, vector<8x22xf32>
    %c0_1 = arith.constant 0 : index
    %c0_2 = arith.constant 0 : index
    %1 = vector.load %arg2[%c0_1, %c0_2] : memref<22x128xf32, #tpu.memory_space<vmem>>, vector<22x128xf32>
    %cst = arith.constant dense<0.000000e+00> : vector<8x128xf32>
    %2 = tpu.matmul %0, %1, %cst {dimension_numbers = #tpu.dot_dimension_numbers<[1], [0], [0], [1], [0, 0, 1, 1], [], []>} : vector<8x22xf32>, vector<22x128xf32>, vector<8x128xf32> -> vector<8x128xf32>
    %c0_3 = arith.constant 0 : index
    %c0_4 = arith.constant 0 : index
    %3 = vector.load %arg3[%c0_3, %c0_4] : memref<1x128xf32, #tpu.memory_space<vmem>>, vector<1x128xf32>
    %4 = vector.broadcast %3 : vector<1x128xf32> to vector<8x128xf32>
    %5 = arith.addf %2, %4 : vector<8x128xf32>
    %cst_5 = arith.constant 0.000000e+00 : f32
    %6 = vector.broadcast %cst_5 : f32 to vector<8x128xf32>
    %7 = arith.maximumf %5, %6 : vector<8x128xf32>
    %8 = arith.truncf %7 : vector<8x128xf32> to vector<8x128xbf16>
    %c0_6 = arith.constant 0 : index
    %c0_7 = arith.constant 0 : index
    %9 = vector.load %arg4[%c0_6, %c0_7] : memref<128x64xbf16, #tpu.memory_space<vmem>>, vector<128x64xbf16>
    %cst_8 = arith.constant dense<0.000000e+00> : vector<8x64xf32>
    %10 = tpu.matmul %8, %9, %cst_8 {dimension_numbers = #tpu.dot_dimension_numbers<[1], [0], [0], [1], [0, 0, 1, 1], [], []>} : vector<8x128xbf16>, vector<128x64xbf16>, vector<8x64xf32> -> vector<8x64xf32>
    %c0_9 = arith.constant 0 : index
    %c0_10 = arith.constant 0 : index
    %11 = vector.load %arg5[%c0_9, %c0_10] : memref<1x64xf32, #tpu.memory_space<vmem>>, vector<1x64xf32>
    %12 = vector.broadcast %11 : vector<1x64xf32> to vector<8x64xf32>
    %13 = arith.addf %10, %12 : vector<8x64xf32>
    %cst_11 = arith.constant 0.000000e+00 : f32
    %14 = vector.broadcast %cst_11 : f32 to vector<8x64xf32>
    %15 = arith.maximumf %13, %14 : vector<8x64xf32>
    %16 = arith.truncf %15 : vector<8x64xf32> to vector<8x64xbf16>
    %c0_12 = arith.constant 0 : index
    %c0_13 = arith.constant 0 : index
    %17 = vector.load %arg6[%c0_12, %c0_13] : memref<64x32xbf16, #tpu.memory_space<vmem>>, vector<64x32xbf16>
    %cst_14 = arith.constant dense<0.000000e+00> : vector<8x32xf32>
    %18 = tpu.matmul %16, %17, %cst_14 {dimension_numbers = #tpu.dot_dimension_numbers<[1], [0], [0], [1], [0, 0, 1, 1], [], []>} : vector<8x64xbf16>, vector<64x32xbf16>, vector<8x32xf32> -> vector<8x32xf32>
    %c0_15 = arith.constant 0 : index
    %c0_16 = arith.constant 0 : index
    %19 = vector.load %arg7[%c0_15, %c0_16] : memref<1x32xf32, #tpu.memory_space<vmem>>, vector<1x32xf32>
    %20 = vector.broadcast %19 : vector<1x32xf32> to vector<8x32xf32>
    %21 = arith.addf %18, %20 : vector<8x32xf32>
    %cst_17 = arith.constant 0.000000e+00 : f32
    %22 = vector.broadcast %cst_17 : f32 to vector<8x32xf32>
    %23 = arith.maximumf %21, %22 : vector<8x32xf32>
    %24 = arith.truncf %23 : vector<8x32xf32> to vector<8x32xbf16>
    %c0_18 = arith.constant 0 : index
    %c0_19 = arith.constant 0 : index
    %25 = vector.load %arg8[%c0_18, %c0_19] : memref<32x8xbf16, #tpu.memory_space<vmem>>, vector<32x8xbf16>
    %cst_20 = arith.constant dense<0.000000e+00> : vector<8x8xf32>
    %26 = tpu.matmul %24, %25, %cst_20 {dimension_numbers = #tpu.dot_dimension_numbers<[1], [0], [0], [1], [0, 0, 1, 1], [], []>} : vector<8x32xbf16>, vector<32x8xbf16>, vector<8x8xf32> -> vector<8x8xf32>
    %c0_21 = arith.constant 0 : index
    %c0_22 = arith.constant 0 : index
    %27 = vector.load %arg9[%c0_21, %c0_22] : memref<1x8xf32, #tpu.memory_space<vmem>>, vector<1x8xf32>
    %28 = vector.broadcast %27 : vector<1x8xf32> to vector<8x8xf32>
    %29 = arith.addf %26, %28 : vector<8x8xf32>
    %30 = math.tanh %29 : vector<8x8xf32>
    %c0_23 = arith.constant 0 : index
    %c0_24 = arith.constant 0 : index
    %31 = vector.load %arg10[%c0_23, %c0_24] : memref<8x8xf32, #tpu.memory_space<vmem>>, vector<8x8xf32>
    tpu.vector_store %arg10[%c0_23, %c0_24], %30 {strides = array<i32>} : memref<8x8xf32, #tpu.memory_space<vmem>>, vector<8x8xf32>,
    return
  }
  func.func @transform_0(%arg0: i32) -> (i32, i32) {
    %c0_i32 = arith.constant 0 : i32
    %c0_i32_0 = arith.constant 0 : i32
    return %arg0, %c0_i32 : i32, i32
  }
  func.func @transform_1(%arg0: i32) -> (i32, i32) {
    %c0_i32 = arith.constant 0 : i32
    %c0_i32_0 = arith.constant 0 : i32
    %c0_i32_1 = arith.constant 0 : i32
    return %c0_i32, %c0_i32_0 : i32, i32
  }
  func.func @transform_2(%arg0: i32) -> (i32, i32) {
    %c0_i32 = arith.constant 0 : i32
    %c0_i32_0 = arith.constant 0 : i32
    %c0_i32_1 = arith.constant 0 : i32
    return %c0_i32, %c0_i32_0 : i32, i32
  }
  func.func @transform_3(%arg0: i32) -> (i32, i32) {
    %c0_i32 = arith.constant 0 : i32
    %c0_i32_0 = arith.constant 0 : i32
    %c0_i32_1 = arith.constant 0 : i32
    return %c0_i32, %c0_i32_0 : i32, i32
  }
  func.func @transform_4(%arg0: i32) -> (i32, i32) {
    %c0_i32 = arith.constant 0 : i32
    %c0_i32_0 = arith.constant 0 : i32
    %c0_i32_1 = arith.constant 0 : i32
    return %c0_i32, %c0_i32_0 : i32, i32
  }
  func.func @transform_5(%arg0: i32) -> (i32, i32) {
    %c0_i32 = arith.constant 0 : i32
    %c0_i32_0 = arith.constant 0 : i32
    %c0_i32_1 = arith.constant 0 : i32
    return %c0_i32, %c0_i32_0 : i32, i32
  }
  func.func @transform_6(%arg0: i32) -> (i32, i32) {
    %c0_i32 = arith.constant 0 : i32
    %c0_i32_0 = arith.constant 0 : i32
    %c0_i32_1 = arith.constant 0 : i32
    return %c0_i32, %c0_i32_0 : i32, i32
  }
  func.func @transform_7(%arg0: i32) -> (i32, i32) {
    %c0_i32 = arith.constant 0 : i32
    %c0_i32_0 = arith.constant 0 : i32
    %c0_i32_1 = arith.constant 0 : i32
    return %c0_i32, %c0_i32_0 : i32, i32
  }
  func.func @transform_8(%arg0: i32) -> (i32, i32) {
    %c0_i32 = arith.constant 0 : i32
    %c0_i32_0 = arith.constant 0 : i32
    %c0_i32_1 = arith.constant 0 : i32
    return %c0_i32, %c0_i32_0 : i32, i32
  }
  func.func @transform_9(%arg0: i32) -> (i32, i32) {
    %c0_i32 = arith.constant 0 : i32
    %c0_i32_0 = arith.constant 0 : i32
    return %arg0, %c0_i32 : i32, i32
  }
}

</mosaic_0001>

<llo_original>
// kernel: tpu_custom_call.1
$region0: #{tpu_custom_call.1}
  #allocation0 [shape = 'u32[]', space=smem, size = 0x4, offset = 0x4, fixed_abs, tag = 'smem constant byte address 0x4 - core index']
  #allocation1 [shape = 'u32[144,128]{1,0:T(1,128)}', space=vmem, size = 0x12000, scoped, tag = 'internal scratch']
  %s0 = inlined_call_operand.vmem [shape: f32[8,22], index: 0, kind: input, shape index: {}]
  %s1 = inlined_call_operand.vmem [shape: f32[22,128], index: 1, kind: input, shape index: {}]
  %s2 = inlined_call_operand.vmem [shape: f32[1,128], index: 2, kind: input, shape index: {}]
  %s3 = inlined_call_operand.vmem [shape: bf16[128,64], index: 3, kind: input, shape index: {}]
  %s4 = inlined_call_operand.vmem [shape: f32[1,64], index: 4, kind: input, shape index: {}]
  %s5 = inlined_call_operand.vmem [shape: bf16[64,32], index: 5, kind: input, shape index: {}]
  %s6 = inlined_call_operand.vmem [shape: f32[1,32], index: 6, kind: input, shape index: {}]
  %s7 = inlined_call_operand.vmem [shape: bf16[32,8], index: 7, kind: input, shape index: {}]
  %s8 = inlined_call_operand.vmem [shape: f32[1,8], index: 8, kind: input, shape index: {}]
  %s9 = inlined_call_operand.hbm [shape: f32[8,8], index: 9, kind: output, shape index: {}]
  %s10 = sld [smem:[#allocation0]]
  $region46: #{tpu_custom_call.1} parent=0
    _
  %s12 = ssub.s32 1, %s10
  %s13 = scalar_select 0, %s12, %s10
  $region1: #{tpu_custom_call.1} parent=0
    #allocation2 [shape = 'u8[4096]{0}', space=vmem, size = 0x1000, scoped, tag = 'output window, operand 0, single buffered']
    #allocation3 [shape = 's32[1]{0}', space=sflag, size = 0x4, scoped, tag = 'scoped memory for tpu_custom_call.1']
    %14 = vsyncpa [#allocation3], 0
    // Predicated region
    $region2: #{tpu_custom_call.1} parent=1 // pred_check
      _
    $region3: #{tpu_custom_call.1} parent=1 // pred_check_branch
      %16 = sbr.rel (0) target = $region5
    $region4: #{tpu_custom_call.1} parent=1 // pred_region
      _
    $region5: #{tpu_custom_call.1} parent=1 // pred_fallthru
      _
    // Predicated region
    $region6: #{tpu_custom_call.1} parent=1 // pred_check
      _
    $region7: #{tpu_custom_call.1} parent=1 // pred_check_branch
      %18 = sbr.rel (0) target = $region9
    $region8: #{tpu_custom_call.1} parent=1 // pred_region
      _
    $region9: #{tpu_custom_call.1} parent=1 // pred_fallthru
      _
    // Predicated region
    $region10: #{tpu_custom_call.1} parent=1 // pred_check
      _
    $region11: #{tpu_custom_call.1} parent=1 // pred_check_branch
      %20 = sbr.rel (0) target = $region13
    $region12: #{tpu_custom_call.1} parent=1 // pred_region
      _
    $region13: #{tpu_custom_call.1} parent=1 // pred_fallthru
      _
    // Predicated region
    $region14: #{tpu_custom_call.1} parent=1 // pred_check
      _
    $region15: #{tpu_custom_call.1} parent=1 // pred_check_branch
      %22 = sbr.rel (0) target = $region17
    $region16: #{tpu_custom_call.1} parent=1 // pred_region
      _
    $region17: #{tpu_custom_call.1} parent=1 // pred_fallthru
      _
    // Predicated region
    $region18: #{tpu_custom_call.1} parent=1 // pred_check
      _
    $region19: #{tpu_custom_call.1} parent=1 // pred_check_branch
      %24 = sbr.rel (0) target = $region21
    $region20: #{tpu_custom_call.1} parent=1 // pred_region
      _
    $region21: #{tpu_custom_call.1} parent=1 // pred_fallthru
      _
    // Predicated region
    $region22: #{tpu_custom_call.1} parent=1 // pred_check
      _
    $region23: #{tpu_custom_call.1} parent=1 // pred_check_branch
      %26 = sbr.rel (0) target = $region25
    $region24: #{tpu_custom_call.1} parent=1 // pred_region
      _
    $region25: #{tpu_custom_call.1} parent=1 // pred_fallthru
      _
    // Predicated region
    $region26: #{tpu_custom_call.1} parent=1 // pred_check
      _
    $region27: #{tpu_custom_call.1} parent=1 // pred_check_branch
      %28 = sbr.rel (0) target = $region29
    $region28: #{tpu_custom_call.1} parent=1 // pred_region
      _
    $region29: #{tpu_custom_call.1} parent=1 // pred_fallthru
      _
    // Predicated region
    $region30: #{tpu_custom_call.1} parent=1 // pred_check
      _
    $region31: #{tpu_custom_call.1} parent=1 // pred_check_branch
      %30 = sbr.rel (0) target = $region33
    $region32: #{tpu_custom_call.1} parent=1 // pred_region
      _
    $region33: #{tpu_custom_call.1} parent=1 // pred_fallthru
      _
    // Predicated region
    $region34: #{tpu_custom_call.1} parent=1 // pred_check
      _
    $region35: #{tpu_custom_call.1} parent=1 // pred_check_branch
      %32 = sbr.rel (0) target = $region37
    $region36: #{tpu_custom_call.1} parent=1 // pred_region
      _
    $region37: #{tpu_custom_call.1} parent=1 // pred_fallthru
      _
    %v34 = vld [vmem:[%s0] sm:$0xff]
    %v35 = vld [vmem:[%s1] sm:$0xff]
    %v36 = vld [vmem:[%s1 + $0x8] sm:$0xff]
    %v37 = vld [vmem:[%s1 + $0x10] sm:$0x3f]
    %v38 = vld [vmem:[%s2] sm:$0x1]
    %v40 = vlaneseq
    %v41 = vshrl.u32 %v40, 7
    %v42 = vsub.s32 0, %v41
    %v43 = vrot.slane %v38, %v42
    %vm45 = vcmask 179200
    %v47 = vsel %vm45, %v34, 0
    %vm49 = vcmask 1045504
    %v51 = vsel %vm49, %v37, 0
    %53 = vmatprep.subr.mxu0 0.0
    %54 = vmatpush1.msra.mxu0 %v35
    %55 = vmatprep.subr.mxu0 0.0
    %56 = vmatpush1.msra.mxu0 %v36
    %57 = vmatprep.subr.mxu0 0.0
    %58 = vmatpush1.msra.mxu0 %v51
    %59 = vmatprep.subr.mxu0 0.0
    %60 = vmatpush1.msra.mxu0 0.0
    %61 = vmatprep.subr.mxu0 0.0
    %62 = vmatpush1.msra.mxu0 0.0
    %63 = vmatprep.subr.mxu0 0.0
    %64 = vmatpush1.msra.mxu0 0.0
    %65 = vmatprep.subr.mxu0 0.0
    %66 = vmatpush1.msra.mxu0 0.0
    %67 = vmatprep.subr.mxu0 0.0
    %68 = vmatpush1.msra.mxu0 0.0
    %69 = vmatprep.subr.mxu0 0.0
    %70 = vmatpush1.msra.mxu0 0.0
    %71 = vmatprep.subr.mxu0 0.0
    %72 = vmatpush1.msra.mxu0 0.0
    %73 = vmatprep.subr.mxu0 0.0
    %74 = vmatpush1.msra.mxu0 0.0
    %75 = vmatprep.subr.mxu0 0.0
    %76 = vmatpush1.msra.mxu0 0.0
    %77 = vmatprep.subr.mxu0 0.0
    %78 = vmatpush1.msra.mxu0 0.0
    %79 = vmatprep.subr.mxu0 0.0
    %80 = vmatpush1.msra.mxu0 0.0
    %81 = vmatprep.subr.mxu0 0.0
    %82 = vmatpush1.msra.mxu0 0.0
    %83 = vmatprep.subr.mxu0 0.0
    %84 = vmatpush1.msra.mxu0 0.0
    %85 = vmatprep.subr.mxu0 0.0
    %86 = vmatpush1.msra.mxu0 0.0
    %87 = vmatprep.subr.mxu0 0.0
    %88 = vmatpush1.msra.mxu0 0.0
    %89 = vmatprep.subr.mxu0 0.0
    %90 = vmatpush1.msra.mxu0 0.0
    %91 = vmatprep.subr.mxu0 0.0
    %92 = vmatpush1.msra.mxu0 0.0
    %93 = vmatprep.subr.mxu0 0.0
    %94 = vmatpush1.msra.mxu0 0.0
    %95 = vmatprep.subr.mxu0 0.0
    %96 = vmatpush1.msra.mxu0 0.0
    %97 = vmatprep.subr.mxu0 0.0
    %98 = vmatpush1.msra.mxu0 0.0
    %99 = vmatprep.subr.mxu0 0.0
    %100 = vmatpush1.msra.mxu0 0.0
    %101 = vmatprep.subr.mxu0 0.0
    %102 = vmatpush1.msra.mxu0 0.0
    %103 = vmatprep.subr.mxu0 0.0
    %104 = vmatpush1.msra.mxu0 0.0
    %105 = vmatprep.subr.mxu0 0.0
    %106 = vmatpush1.msra.mxu0 0.0
    %107 = vmatprep.subr.mxu0 0.0
    %108 = vmatpush1.msra.mxu0 0.0
    %109 = vmatprep.subr.mxu0 0.0
    %110 = vmatpush1.msra.mxu0 0.0
    %111 = vmatprep.subr.mxu0 0.0
    %112 = vmatpush1.msra.mxu0 0.0
    %113 = vmatprep.subr.mxu0 0.0
    %114 = vmatpush1.msra.mxu0 0.0
    %115 = vmatprep.subr.mxu0 0.0
    %116 = vmatpush1.msra.mxu0 0.0
    %117 = vmatprep.mubr.f32.mxu0 0.0
    %118 = vmatmul.mubr.f32.gmra.mrb[0].mxu0 %v47
    %v119 = vpop.f32.mrb[0].mxu0
    %v120 = vadd.f32 %v43, %v119
    %v121 = vpop.f32.mrb[0].mxu0
    %122 = vdwg.mxu0
    %v123 = vmax.f32 %v120, 0.0
    %v124 = vpack.c.bf16 %v123, %v123
    %v125 = vld [vmem:[%s3] sm:$0xf]
    %v126 = vld [vmem:[%s3 + $0x4] sm:$0xf]
    %v127 = vld [vmem:[%s3 + $0x8] sm:$0xf]
    %v128 = vld [vmem:[%s3 + $0xc] sm:$0xf]
    %v129 = vld [vmem:[%s3 + $0x10] sm:$0xf]
    %v130 = vld [vmem:[%s3 + $0x14] sm:$0xf]
    %v131 = vld [vmem:[%s3 + $0x18] sm:$0xf]
    %v132 = vld [vmem:[%s3 + $0x1c] sm:$0xf]
    %v133 = vld [vmem:[%s3 + $0x20] sm:$0xf]
    %v134 = vld [vmem:[%s3 + $0x24] sm:$0xf]
    %v135 = vld [vmem:[%s3 + $0x28] sm:$0xf]
    %v136 = vld [vmem:[%s3 + $0x2c] sm:$0xf]
    %v137 = vld [vmem:[%s3 + $0x30] sm:$0xf]
    %v138 = vld [vmem:[%s3 + $0x34] sm:$0xf]
    %v139 = vld [vmem:[%s3 + $0x38] sm:$0xf]
    %v140 = vld [vmem:[%s3 + $0x3c] sm:$0xf]
    %v141 = vld [vmem:[%s4] sm:$0x1]
    %v143 = vlaneseq
    %v144 = vshrl.u32 %v143, 7
    %v145 = vsub.s32 0, %v144
    %v146 = vrot.slane %v141, %v145
    %v164 = vunpack.c.l.b16 %v125
    %v165 = vunpack.c.l.b16 %v126
    %v166 = vunpack.c.l.b16 %v127
    %v167 = vunpack.c.l.b16 %v128
    %v168 = vunpack.c.l.b16 %v129
    %v169 = vunpack.c.l.b16 %v130
    %v170 = vunpack.c.l.b16 %v131
    %v171 = vunpack.c.l.b16 %v132
    %v172 = vunpack.c.l.b16 %v133
    %v173 = vunpack.c.l.b16 %v134
    %v174 = vunpack.c.l.b16 %v135
    %v175 = vunpack.c.l.b16 %v136
    %v176 = vunpack.c.l.b16 %v137
    %v177 = vunpack.c.l.b16 %v138
    %v178 = vunpack.c.l.b16 %v139
    %v179 = vunpack.c.l.b16 %v140
    %v180 = vpack.c.b16 %v165, %v164
    %v181 = vpack.c.b16 %v167, %v166
    %v182 = vpack.c.b16 %v169, %v168
    %v183 = vpack.c.b16 %v171, %v170
    %v184 = vpack.c.b16 %v173, %v172
    %v185 = vpack.c.b16 %v175, %v174
    %v186 = vpack.c.b16 %v177, %v176
    %v187 = vpack.c.b16 %v179, %v178
    %196 = vmatprep.subr.bf16.mxu0 0
    %197 = vmatpush1.bf16.msra.mxu0 %v180
    %198 = vmatprep.subr.bf16.mxu0 0
    %199 = vmatpush1.bf16.msra.mxu0 %v181
    %200 = vmatprep.subr.bf16.mxu0 0
    %201 = vmatpush1.bf16.msra.mxu0 %v182
    %202 = vmatprep.subr.bf16.mxu0 0
    %203 = vmatpush1.bf16.msra.mxu0 %v183
    %204 = vmatprep.subr.bf16.mxu0 0
    %205 = vmatpush1.bf16.msra.mxu0 %v184
    %206 = vmatprep.subr.bf16.mxu0 0
    %207 = vmatpush1.bf16.msra.mxu0 %v185
    %208 = vmatprep.subr.bf16.mxu0 0
    %209 = vmatpush1.bf16.msra.mxu0 %v186
    %210 = vmatprep.subr.bf16.mxu0 0
    %211 = vmatpush1.bf16.msra.mxu0 %v187
    %212 = vmatprep.subr.bf16.mxu0 0
    %213 = vmatpush1.bf16.msra.mxu0 0
    %214 = vmatprep.subr.bf16.mxu0 0
    %215 = vmatpush1.bf16.msra.mxu0 0
    %216 = vmatprep.subr.bf16.mxu0 0
    %217 = vmatpush1.bf16.msra.mxu0 0
    %218 = vmatprep.subr.bf16.mxu0 0
    %219 = vmatpush1.bf16.msra.mxu0 0
    %220 = vmatprep.subr.bf16.mxu0 0
    %221 = vmatpush1.bf16.msra.mxu0 0
    %222 = vmatprep.subr.bf16.mxu0 0
    %223 = vmatpush1.bf16.msra.mxu0 0
    %224 = vmatprep.subr.bf16.mxu0 0
    %225 = vmatpush1.bf16.msra.mxu0 0
    %226 = vmatprep.subr.bf16.mxu0 0
    %227 = vmatpush1.bf16.msra.mxu0 0
    %228 = vmatprep.mubr.bf16.mxu0 0
    %229 = vmatmul.mubr.bf16.gmra.mrb[0].mxu0 %v124
    %v230 = vpop.f32.mrb[0].mxu0
    %v231 = vadd.f32 %v146, %v230
    %v232 = vpop.f32.mrb[0].mxu0
    %v233 = vpop.f32.mrb[0].mxu0
    %v234 = vpop.f32.mrb[0].mxu0
    %235 = vdwg.mxu0
    %v236 = vmax.f32 %v231, 0.0
    %v237 = vpack.c.bf16 %v236, %v236
    %v238 = vld [vmem:[%s5] sm:$0xf]
    %v239 = vld [vmem:[%s5 + $0x4] sm:$0xf]
    %v240 = vld [vmem:[%s5 + $0x8] sm:$0xf]
    %v241 = vld [vmem:[%s5 + $0xc] sm:$0xf]
    %v242 = vld [vmem:[%s5 + $0x10] sm:$0xf]
    %v243 = vld [vmem:[%s5 + $0x14] sm:$0xf]
    %v244 = vld [vmem:[%s5 + $0x18] sm:$0xf]
    %v245 = vld [vmem:[%s5 + $0x1c] sm:$0xf]
    %v246 = vld [vmem:[%s6] sm:$0x1]
    %v248 = vlaneseq
    %v249 = vshrl.u32 %v248, 7
    %v250 = vsub.s32 0, %v249
    %v251 = vrot.slane %v246, %v250
    %v261 = vunpack.c.l.b16 %v238
    %v262 = vunpack.c.l.b16 %v239
    %v263 = vunpack.c.l.b16 %v240
    %v264 = vunpack.c.l.b16 %v241
    %v265 = vunpack.c.l.b16 %v242
    %v266 = vunpack.c.l.b16 %v243
    %v267 = vunpack.c.l.b16 %v244
    %v268 = vunpack.c.l.b16 %v245
    %v269 = vpack.c.b16 %v262, %v261
    %v270 = vpack.c.b16 %v264, %v263
    %v271 = vpack.c.b16 %v266, %v265
    %v272 = vpack.c.b16 %v268, %v267
    %vm277 = vcmask 523264
    %v279 = vsel %vm277, %v237, 0
    %281 = vmatprep.subr.bf16.mxu0 0
    %282 = vmatpush1.bf16.msra.mxu0 %v269
    %283 = vmatprep.subr.bf16.mxu0 0
    %284 = vmatpush1.bf16.msra.mxu0 %v270
    %285 = vmatprep.subr.bf16.mxu0 0
    %286 = vmatpush1.bf16.msra.mxu0 %v271
    %287 = vmatprep.subr.bf16.mxu0 0
    %288 = vmatpush1.bf16.msra.mxu0 %v272
    %289 = vmatprep.subr.bf16.mxu0 0
    %290 = vmatpush1.bf16.msra.mxu0 0
    %291 = vmatprep.subr.bf16.mxu0 0
    %292 = vmatpush1.bf16.msra.mxu0 0
    %293 = vmatprep.subr.bf16.mxu0 0
    %294 = vmatpush1.bf16.msra.mxu0 0
    %295 = vmatprep.subr.bf16.mxu0 0
    %296 = vmatpush1.bf16.msra.mxu0 0
    %297 = vmatprep.subr.bf16.mxu0 0
    %298 = vmatpush1.bf16.msra.mxu0 0
    %299 = vmatprep.subr.bf16.mxu0 0
    %300 = vmatpush1.bf16.msra.mxu0 0
    %301 = vmatprep.subr.bf16.mxu0 0
    %302 = vmatpush1.bf16.msra.mxu0 0
    %303 = vmatprep.subr.bf16.mxu0 0
    %304 = vmatpush1.bf16.msra.mxu0 0
    %305 = vmatprep.subr.bf16.mxu0 0
    %306 = vmatpush1.bf16.msra.mxu0 0
    %307 = vmatprep.subr.bf16.mxu0 0
    %308 = vmatpush1.bf16.msra.mxu0 0
    %309 = vmatprep.subr.bf16.mxu0 0
    %310 = vmatpush1.bf16.msra.mxu0 0
    %311 = vmatprep.subr.bf16.mxu0 0
    %312 = vmatpush1.bf16.msra.mxu0 0
    %313 = vmatprep.mubr.bf16.mxu0 0
    %314 = vmatmul.mubr.bf16.gmra.mrb[0].mxu0 %v279
    %v315 = vpop.f32.mrb[0].mxu0
    %v316 = vadd.f32 %v251, %v315
    %v317 = vpop.f32.mrb[0].mxu0
    %v318 = vpop.f32.mrb[0].mxu0
    %v319 = vpop.f32.mrb[0].mxu0
    %320 = vdwg.mxu0
    %v321 = vmax.f32 %v316, 0.0
    %v322 = vpack.c.bf16 %v321, %v321
    %v323 = vld [vmem:[%s7] sm:$0xf]
    %v324 = vld [vmem:[%s7 + $0x4] sm:$0xf]
    %v325 = vld [vmem:[%s7 + $0x8] sm:$0xf]
    %v326 = vld [vmem:[%s7 + $0xc] sm:$0xf]
    %v327 = vld [vmem:[%s8] sm:$0x1]
    %v329 = vlaneseq
    %v330 = vshrl.u32 %v329, 7
    %v331 = vsub.s32 0, %v330
    %v332 = vrot.slane %v327, %v331
    %v338 = vunpack.c.l.b16 %v323
    %v339 = vunpack.c.l.b16 %v324
    %v340 = vunpack.c.l.b16 %v325
    %v341 = vunpack.c.l.b16 %v326
    %v342 = vpack.c.b16 %v339, %v338
    %v343 = vpack.c.b16 %v341, %v340
    %vm346 = vcmask 261120
    %v348 = vsel %vm346, %v322, 0
    %350 = vmatprep.subr.bf16.mxu0 0
    %351 = vmatpush1.bf16.msra.mxu0 %v342
    %352 = vmatprep.subr.bf16.mxu0 0
    %353 = vmatpush1.bf16.msra.mxu0 %v343
    %354 = vmatprep.subr.bf16.mxu0 0
    %355 = vmatpush1.bf16.msra.mxu0 0
    %356 = vmatprep.subr.bf16.mxu0 0
    %357 = vmatpush1.bf16.msra.mxu0 0
    %358 = vmatprep.subr.bf16.mxu0 0
    %359 = vmatpush1.bf16.msra.mxu0 0
    %360 = vmatprep.subr.bf16.mxu0 0
    %361 = vmatpush1.bf16.msra.mxu0 0
    %362 = vmatprep.subr.bf16.mxu0 0
    %363 = vmatpush1.bf16.msra.mxu0 0
    %364 = vmatprep.subr.bf16.mxu0 0
    %365 = vmatpush1.bf16.msra.mxu0 0
    %366 = vmatprep.subr.bf16.mxu0 0
    %367 = vmatpush1.bf16.msra.mxu0 0
    %368 = vmatprep.subr.bf16.mxu0 0
    %369 = vmatpush1.bf16.msra.mxu0 0
    %370 = vmatprep.subr.bf16.mxu0 0
    %371 = vmatpush1.bf16.msra.mxu0 0
    %372 = vmatprep.subr.bf16.mxu0 0
    %373 = vmatpush1.bf16.msra.mxu0 0
    %374 = vmatprep.subr.bf16.mxu0 0
    %375 = vmatpush1.bf16.msra.mxu0 0
    %376 = vmatprep.subr.bf16.mxu0 0
    %377 = vmatpush1.bf16.msra.mxu0 0
    %378 = vmatprep.subr.bf16.mxu0 0
    %379 = vmatpush1.bf16.msra.mxu0 0
    %380 = vmatprep.subr.bf16.mxu0 0
    %381 = vmatpush1.bf16.msra.mxu0 0
    %382 = vmatprep.mubr.bf16.mxu0 0
    %383 = vmatmul.mubr.bf16.gmra.mrb[0].mxu0 %v348
    %v384 = vpop.f32.mrb[0].mxu0
    %v385 = vadd.f32 %v332, %v384
    %v386 = vpop.f32.mrb[0].mxu0
    %v387 = vpop.f32.mrb[0].mxu0
    %v388 = vpop.f32.mrb[0].mxu0
    %389 = vdwg.mxu0
    %v390 = vtanh.pop %v385
    %vm391 = vcmask 64512
    %392 = vst.msk [vmem:[#allocation2] sm:$0xff] %vm391, %v390
    // Predicated region
    $region38: #{tpu_custom_call.1} parent=1 // pred_check
      _
    $region39: #{tpu_custom_call.1} parent=1 // pred_check_branch
      %394 = sbr.rel (0) target = $region41
    $region40: #{tpu_custom_call.1} parent=1 // pred_region
      %s396 = ssub.s32 128, 128
      %397 = vsyncadd [#allocation3], %s396
      %s399 = sshll.u32 [#allocation2], 4
      %s400 = int_to_ptr.vmem [resolvable:$true] %s399
      %402 = dma.vmem_to_hbm [thread:$0]  %s400, 128, %s9, [#allocation3]
    $region41: #{tpu_custom_call.1} parent=1 // pred_fallthru
      _
    // Predicated region
    $region42: #{tpu_custom_call.1} parent=1 // pred_check
      _
    $region43: #{tpu_custom_call.1} parent=1 // pred_check_branch
      %404 = sbr.rel (0) target = $region45
    $region44: #{tpu_custom_call.1} parent=1 // pred_region
      %405 = dma.done [#allocation3], 128
    $region45: #{tpu_custom_call.1} parent=1 // pred_fallthru
      _
    %406 = vsyncpa [#allocation3], 1

</llo_original>
